<compile_context>
chip_gen: v6e
topology: v6e:2x2x1
jax: 0.10.0
libtpu: 0.0.40
codegen_flags: <defaults>
</compile_context>

<pallas_src>
import numpy as np

import jax
import jax.numpy as jnp
from jax import lax
from jax.experimental import pallas as pl
from jax.experimental.pallas import tpu as pltpu


def _concat_embed_kernel(embed_ref, w_ref, gb_ref, m_ref, inp_ref, out_ref):
    """Linear -> BatchNorm1d(train) -> LeakyReLU -> replicate-to-4x4 + concat.

    embed_ref : (B, E)                    embedding
    w_ref     : (P, E)                    Linear weight (bias cancels under BN)
    gb_ref    : (2, P)                    row 0 = gamma, row 1 = beta
    m_ref     : (C*HW + P, (C+P)*HW)      constant blockdiag(I_{C*HW}, R)
    inp_ref   : (B, C*HW)                 lane-dense 2-D view of NCHW input
    out_ref   : (B, (C+P)*HW)             lane-dense 2-D view of NCHW output
    """
    # ---- Linear: (B, E) x (P, E) contracted on E -> (B, P), on the MXU.
    # Bias omitted: training-mode BatchNorm subtracts the batch mean right
    # after, which cancels a per-feature constant exactly.
    proj = lax.dot_general(embed_ref[...], w_ref[...],
                           dimension_numbers=(((1,), (1,)), ((), ())),
                           preferred_element_type=jnp.float32)      # (B, P)

    # ---- BatchNorm1d (training mode: batch stats, biased var, eps=1e-5),
    # stats via E[x^2] - E[x]^2, folded into one scale/shift.
    inv_b = jnp.float32(1.0 / proj.shape[0])
    mean = jnp.sum(proj, axis=0, keepdims=True) * inv_b              # (1, P)
    ex2 = jnp.sum(proj * proj, axis=0, keepdims=True) * inv_b        # (1, P)
    var = jnp.maximum(ex2 - mean * mean, 0.0)                        # (1, P)
    scale = gb_ref[0:1, :] * lax.rsqrt(var + 1e-5)                   # (1, P)
    shift = gb_ref[1:2, :] - mean * scale                            # (1, P)
    norm = proj * scale + shift                                      # (B, P)

    # ---- LeakyReLU(0.2)
    act = jnp.where(norm > 0, norm, 0.2 * norm)                      # (B, P)

    # ---- Replicate-to-4x4 + channel-concat fused into one MXU pass:
    # [inp2d | act] @ blockdiag(I, R) yields the full lane-dense output row,
    # written with a single unmasked full-width store (no masked vst at the
    # C*HW lane boundary, no 64-lane rotate of the replicated slab).
    lhs = jnp.concatenate([inp_ref[...].astype(jnp.float32), act], axis=1)
    row = jnp.dot(lhs, m_ref[...], preferred_element_type=jnp.float32)
    out_ref[...] = row.astype(out_ref.dtype)


def _passthrough_replicate_matrix(chw, p, hw):
    """Host-side constant blockdiag(I_{chw}, R), R[q, q*hw + s] = 1."""
    n_out = chw + p * hw
    m = np.zeros((chw + p, n_out), np.float32)
    m[:chw, :chw] = np.eye(chw, dtype=np.float32)
    cols = np.arange(p * hw) // hw
    m[chw:, chw:] = (cols[None, :] == np.arange(p)[:, None]).astype(np.float32)
    return jnp.asarray(m)


def concat_embed(inp, embed, weight, bias, gamma, beta):
    """inp: (B, C, 4, 4), embed: (B, E), weight: (P, E), bias/gamma/beta: (P,).

    `bias` is accepted for interface parity with the PyTorch module but unused:
    with training-mode BatchNorm directly after the Linear layer, the bias is
    cancelled exactly by the batch-mean subtraction.  (If the module is ever
    run in eval mode with running stats, fold the bias back in.)
    """
    B, C, H, W = inp.shape
    assert (H, W) == (4, 4), "concatEmbed replicates the embedding to 4x4"
    assert B % 8 == 0, ("batch must be a multiple of 8 so in-kernel batch "
                        "mean/var never includes sublane padding rows")
    P, E = weight.shape
    HW = H * W
    CHW = C * HW
    del bias  # mathematically a no-op under training-mode BatchNorm

    # Lane-dense 2-D views (free reshapes of the row-major NCHW layout).
    inp2d = inp.reshape(B, CHW)
    out2d_shape = jax.ShapeDtypeStruct((B, (C + P) * HW), inp.dtype)

    # Packed / precomputed operands: fewer DMAs, no in-kernel constant build.
    gb = jnp.stack([gamma, beta], axis=0).astype(jnp.float32)      # (2, P)
    m_const = _passthrough_replicate_matrix(CHW, P, HW)            # (CHW+P, (C+P)*HW)

    flops = 2 * B * E * P + 2 * B * (CHW + P) * ((C + P) * HW)
    bytes_accessed = int(
        embed.size * embed.dtype.itemsize
        + weight.size * weight.dtype.itemsize
        + gb.size * 4
        + m_const.size * 4
        + inp.size * inp.dtype.itemsize
        + B * (C + P) * HW * inp.dtype.itemsize)

    vmem = pl.BlockSpec(memory_space=pltpu.MemorySpace.VMEM)
    out2d = pl.pallas_call(
        _concat_embed_kernel,
        out_shape=out2d_shape,
        in_specs=[vmem] * 5,
        out_specs=vmem,
        cost_estimate=pl.CostEstimate(flops=flops, transcendentals=0,
                                      bytes_accessed=bytes_accessed),
    )(embed, weight, gb, m_const, inp2d)

    return out2d.reshape(B, C + P, H, W)


def _reference(inp, embed, weight, bias, gamma, beta):
    proj = embed @ weight.T + bias
    mean = proj.mean(axis=0, keepdims=True)
    var = ((proj - mean) ** 2).mean(axis=0, keepdims=True)
    norm = (proj - mean) / jnp.sqrt(var + 1e-5) * gamma + beta
    act = jnp.where(norm > 0, norm, 0.2 * norm)
    B, C, H, W = inp.shape
    rep = jnp.broadcast_to(act[:, :, None, None], (B, act.shape[-1], H, W))
    return jnp.concatenate([inp, rep], axis=1)


if __name__ == "__main__":
    # Small shapes implied by the forward: spatial must be 4x4 (repeat(4,4,1,1)).
    # B is a multiple of 8 so batch statistics see no sublane padding.
    B, C, H, W = 8, 4, 4, 4
    E, P = 32, 16

    key = jax.random.PRNGKey(0)
    k_inp, k_emb, k_w, k_b, k_g, k_be = jax.random.split(key, 6)

    inp = jax.random.normal(k_inp, (B, C, H, W), dtype=jnp.float32)
    embed = jax.random.normal(k_emb, (B, E), dtype=jnp.float32)

    # PyTorch Linear-style uniform init; non-trivial BN affine to exercise it.
    bound = 1.0 / (E ** 0.5)
    weight = jax.random.uniform(k_w, (P, E), jnp.float32, -bound, bound)
    bias = jax.random.uniform(k_b, (P,), jnp.float32, -bound, bound)
    gamma = 1.0 + 0.1 * jax.random.normal(k_g, (P,), dtype=jnp.float32)
    beta = 0.1 * jax.random.normal(k_be, (P,), dtype=jnp.float32)

    out = concat_embed(inp, embed, weight, bias, gamma, beta)
    out = jax.block_until_ready(out)

    ref = _reference(inp, embed, weight, bias, gamma, beta)
    assert out.shape == (B, C + P, H, W)
    assert jnp.allclose(out, ref, atol=1e-4, rtol=1e-4)
    print("KERNEL_OK")
</pallas_src>

<mosaic_0001>
module attributes {stable_mosaic.version = 11 : i64} {
  func.func @_concat_embed_kernel(%arg0: memref<8x32xf32, #tpu.memory_space<vmem>>, %arg1: memref<16x32xf32, #tpu.memory_space<vmem>>, %arg2: memref<2x16xf32, #tpu.memory_space<vmem>>, %arg3: memref<80x320xf32, #tpu.memory_space<vmem>>, %arg4: memref<8x64xf32, #tpu.memory_space<vmem>>, %arg5: memref<8x320xf32, #tpu.memory_space<vmem>>) attributes {dimension_semantics = [], scalar_prefetch = 0 : i64, scratch_operands = 0 : i64, tpu.core_type = #tpu.core_type<tc>} {
    %c0 = arith.constant 0 : index
    %c0_0 = arith.constant 0 : index
    %0 = vector.load %arg0[%c0, %c0_0] : memref<8x32xf32, #tpu.memory_space<vmem>>, vector<8x32xf32>
    %c0_1 = arith.constant 0 : index
    %c0_2 = arith.constant 0 : index
    %1 = vector.load %arg1[%c0_1, %c0_2] : memref<16x32xf32, #tpu.memory_space<vmem>>, vector<16x32xf32>
    %cst = arith.constant dense<0.000000e+00> : vector<8x16xf32>
    %2 = tpu.matmul %0, %1, %cst {dimension_numbers = #tpu.dot_dimension_numbers<[1], [1], [0], [0], [0, 0, 1, 0], [], []>} : vector<8x32xf32>, vector<16x32xf32>, vector<8x16xf32> -> vector<8x16xf32>
    %cst_3 = arith.constant dense<0.000000e+00> : vector<16xf32>
    %3 = vector.multi_reduction <add>, %2, %cst_3 [0] : vector<8x16xf32> to vector<16xf32>
    %4 = vector.shape_cast %3 : vector<16xf32> to vector<1x16xf32>
    %cst_4 = arith.constant 1.250000e-01 : f32
    %5 = vector.broadcast %cst_4 : f32 to vector<1x16xf32>
    %6 = arith.mulf %4, %5 : vector<1x16xf32>
    %7 = arith.mulf %2, %2 : vector<8x16xf32>
    %cst_5 = arith.constant dense<0.000000e+00> : vector<16xf32>
    %8 = vector.multi_reduction <add>, %7, %cst_5 [0] : vector<8x16xf32> to vector<16xf32>
    %9 = vector.shape_cast %8 : vector<16xf32> to vector<1x16xf32>
    %cst_6 = arith.constant 1.250000e-01 : f32
    %10 = vector.broadcast %cst_6 : f32 to vector<1x16xf32>
    %11 = arith.mulf %9, %10 : vector<1x16xf32>
    %12 = arith.mulf %6, %6 : vector<1x16xf32>
    %13 = arith.subf %11, %12 : vector<1x16xf32>
    %cst_7 = arith.constant 0.000000e+00 : f32
    %14 = vector.broadcast %cst_7 : f32 to vector<1x16xf32>
    %15 = arith.maximumf %13, %14 : vector<1x16xf32>
    %c0_8 = arith.constant 0 : index
    %c0_9 = arith.constant 0 : index
    %16 = vector.load %arg2[%c0_8, %c0_9] : memref<2x16xf32, #tpu.memory_space<vmem>>, vector<1x16xf32>
    %cst_10 = arith.constant 9.99999974E-6 : f32
    %17 = vector.broadcast %cst_10 : f32 to vector<1x16xf32>
    %18 = arith.addf %15, %17 : vector<1x16xf32>
    %19 = math.rsqrt %18 : vector<1x16xf32>
    %20 = arith.mulf %16, %19 : vector<1x16xf32>
    %c1 = arith.constant 1 : index
    %c0_11 = arith.constant 0 : index
    %21 = vector.load %arg2[%c1, %c0_11] : memref<2x16xf32, #tpu.memory_space<vmem>>, vector<1x16xf32>
    %22 = arith.mulf %6, %20 : vector<1x16xf32>
    %23 = arith.subf %21, %22 : vector<1x16xf32>
    %24 = vector.broadcast %20 : vector<1x16xf32> to vector<8x16xf32>
    %25 = arith.mulf %2, %24 : vector<8x16xf32>
    %26 = vector.broadcast %23 : vector<1x16xf32> to vector<8x16xf32>
    %27 = arith.addf %25, %26 : vector<8x16xf32>
    %cst_12 = arith.constant 0.000000e+00 : f32
    %28 = vector.broadcast %cst_12 : f32 to vector<8x16xf32>
    %29 = arith.cmpf ogt, %27, %28 : vector<8x16xf32>
    %cst_13 = arith.constant 2.000000e-01 : f32
    %30 = vector.broadcast %cst_13 : f32 to vector<8x16xf32>
    %31 = arith.mulf %30, %27 : vector<8x16xf32>
    %32 = arith.select %29, %27, %31 : vector<8x16xi1>, vector<8x16xf32>
    %c0_14 = arith.constant 0 : index
    %c0_15 = arith.constant 0 : index
    %33 = vector.load %arg4[%c0_14, %c0_15] : memref<8x64xf32, #tpu.memory_space<vmem>>, vector<8x64xf32>
    %34 = tpu.concatenate %33, %32 in 1 : vector<8x64xf32>, vector<8x16xf32> -> vector<8x80xf32>
    %c0_16 = arith.constant 0 : index
    %c0_17 = arith.constant 0 : index
    %35 = vector.load %arg3[%c0_16, %c0_17] : memref<80x320xf32, #tpu.memory_space<vmem>>, vector<80x320xf32>
    %cst_18 = arith.constant dense<0.000000e+00> : vector<8x320xf32>
    %36 = tpu.matmul %34, %35, %cst_18 {dimension_numbers = #tpu.dot_dimension_numbers<[1], [0], [0], [1], [0, 0, 1, 1], [], []>} : vector<8x80xf32>, vector<80x320xf32>, vector<8x320xf32> -> vector<8x320xf32>
    %c0_19 = arith.constant 0 : index
    %c0_20 = arith.constant 0 : index
    %37 = vector.load %arg5[%c0_19, %c0_20] : memref<8x320xf32, #tpu.memory_space<vmem>>, vector<8x320xf32>
    tpu.vector_store %arg5[%c0_19, %c0_20], %36 {strides = array<i32>} : memref<8x320xf32, #tpu.memory_space<vmem>>, vector<8x320xf32>,
    return
  }
}

</mosaic_0001>

<llo_original>
// kernel: tpu_custom_call.1
$region0: #{tpu_custom_call.1}
  #allocation0 [shape = 'u32[]', space=smem, size = 0x4, offset = 0x4, fixed_abs, tag = 'smem constant byte address 0x4 - core index']
  #allocation1 [shape = 'u32[144,128]{1,0:T(1,128)}', space=vmem, size = 0x12000, scoped, tag = 'internal scratch']
  %s0 = inlined_call_operand.hbm [shape: f32[8,32], index: 0, kind: input, shape index: {}]
  %s1 = inlined_call_operand.hbm [shape: f32[16,32], index: 1, kind: input, shape index: {}]
  %s2 = inlined_call_operand.vmem [shape: f32[2,16], index: 2, kind: input, shape index: {}]
  %s3 = inlined_call_operand.hbm [shape: f32[80,320], index: 3, kind: input, shape index: {}]
  %s4 = inlined_call_operand.hbm [shape: f32[8,64], index: 4, kind: input, shape index: {}]
  %s5 = inlined_call_operand.hbm [shape: f32[8,320], index: 5, kind: output, shape index: {}]
  %s6 = sld [smem:[#allocation0]]
  $region46: #{tpu_custom_call.1} parent=0
    _
  %s8 = ssub.s32 1, %s6
  %s9 = scalar_select 0, %s8, %s6
  $region1: #{tpu_custom_call.1} parent=0
    #allocation2 [shape = 'u8[4096]{0}', space=vmem, size = 0x1000, scoped, tag = 'input window, operand 0, single buffered']
    #allocation3 [shape = 's32[1]{0}', space=sflag, size = 0x4, scoped, tag = 'scoped memory for tpu_custom_call.1']
    #allocation4 [shape = 's32[1]{0}', space=sflag, size = 0x4, scoped, tag = 'scoped memory for tpu_custom_call.1']
    #allocation5 [shape = 'u8[8192]{0}', space=vmem, size = 0x2000, scoped, tag = 'input window, operand 1, single buffered']
    #allocation6 [shape = 's32[1]{0}', space=sflag, size = 0x4, scoped, tag = 'scoped memory for tpu_custom_call.1']
    #allocation7 [shape = 'u8[122880]{0}', space=vmem, size = 0x1e000, scoped, tag = 'input window, operand 3, single buffered']
    #allocation8 [shape = 'u8[4096]{0}', space=vmem, size = 0x1000, scoped, tag = 'input window, operand 4, single buffered']
    #allocation9 [shape = 's32[1]{0}', space=sflag, size = 0x4, scoped, tag = 'scoped memory for tpu_custom_call.1']
    #allocation10 [shape = 'u8[12288]{0}', space=vmem, size = 0x3000, scoped, tag = 'output window, operand 0, single buffered']
    %10 = vsyncpa [#allocation3], 0
    %11 = vsyncpa [#allocation6], 0
    %12 = vsyncpa [#allocation9], 0
    %13 = vsyncpa [#allocation4], 0
    // Predicated region
    $region2: #{tpu_custom_call.1} parent=1 // pred_check
      _
    $region3: #{tpu_custom_call.1} parent=1 // pred_check_branch
      %15 = sbr.rel (0) target = $region5
    $region4: #{tpu_custom_call.1} parent=1 // pred_region
      %s17 = ssub.s32 128, 128
      %18 = vsyncadd [#allocation3], %s17
      %s20 = sshll.u32 [#allocation2], 4
      %s21 = int_to_ptr.vmem [resolvable:$true] %s20
      %23 = dma.hbm_to_vmem [thread:$0]  %s0, 128, %s21, [#allocation3]
    $region5: #{tpu_custom_call.1} parent=1 // pred_fallthru
      _
    // Predicated region
    $region6: #{tpu_custom_call.1} parent=1 // pred_check
      _
    $region7: #{tpu_custom_call.1} parent=1 // pred_check_branch
      %25 = sbr.rel (0) target = $region9
    $region8: #{tpu_custom_call.1} parent=1 // pred_region
      %s27 = ssub.s32 256, 256
      %28 = vsyncadd [#allocation6], %s27
      %s29 = sshll.u32 [#allocation5], 4
      %s30 = int_to_ptr.vmem [resolvable:$true] %s29
      %35 = dma.hbm_to_vmem [thread:$0]  %s1, 256, %s30, [#allocation6], 128, 128, 8
    $region9: #{tpu_custom_call.1} parent=1 // pred_fallthru
      _
    // Predicated region
    $region10: #{tpu_custom_call.1} parent=1 // pred_check
      _
    $region11: #{tpu_custom_call.1} parent=1 // pred_check_branch
      %37 = sbr.rel (0) target = $region13
    $region12: #{tpu_custom_call.1} parent=1 // pred_region
      _
    $region13: #{tpu_custom_call.1} parent=1 // pred_fallthru
      _
    // Predicated region
    $region14: #{tpu_custom_call.1} parent=1 // pred_check
      _
    $region15: #{tpu_custom_call.1} parent=1 // pred_check_branch
      %39 = sbr.rel (0) target = $region17
    $region16: #{tpu_custom_call.1} parent=1 // pred_region
      %s41 = ssub.s32 3840, 3840
      %42 = vsyncadd [#allocation6], %s41
      %s43 = sshll.u32 [#allocation7], 4
      %s44 = int_to_ptr.vmem [resolvable:$true] %s43
      %49 = dma.hbm_to_vmem [thread:$0]  %s3, 3840, %s44, [#allocation6], 384, 384, 24
    $region17: #{tpu_custom_call.1} parent=1 // pred_fallthru
      _
    // Predicated region
    $region18: #{tpu_custom_call.1} parent=1 // pred_check
      _
    $region19: #{tpu_custom_call.1} parent=1 // pred_check_branch
      %51 = sbr.rel (0) target = $region21
    $region20: #{tpu_custom_call.1} parent=1 // pred_region
      %s53 = ssub.s32 128, 128
      %54 = vsyncadd [#allocation9], %s53
      %s56 = sshll.u32 [#allocation8], 4
      %s57 = int_to_ptr.vmem [resolvable:$true] %s56
      %59 = dma.hbm_to_vmem [thread:$0]  %s4, 128, %s57, [#allocation9]
    $region21: #{tpu_custom_call.1} parent=1 // pred_fallthru
      _
    // Predicated region
    $region22: #{tpu_custom_call.1} parent=1 // pred_check
      _
    $region23: #{tpu_custom_call.1} parent=1 // pred_check_branch
      %61 = sbr.rel (0) target = $region25
    $region24: #{tpu_custom_call.1} parent=1 // pred_region
      %62 = dma.done [#allocation3], 128
    $region25: #{tpu_custom_call.1} parent=1 // pred_fallthru
      _
    // Predicated region
    $region26: #{tpu_custom_call.1} parent=1 // pred_check
      _
    $region27: #{tpu_custom_call.1} parent=1 // pred_check_branch
      %64 = sbr.rel (0) target = $region29
    $region28: #{tpu_custom_call.1} parent=1 // pred_region
      %65 = dma.done [#allocation6], 256
    $region29: #{tpu_custom_call.1} parent=1 // pred_fallthru
      _
    // Predicated region
    $region30: #{tpu_custom_call.1} parent=1 // pred_check
      _
    $region31: #{tpu_custom_call.1} parent=1 // pred_check_branch
      %67 = sbr.rel (0) target = $region33
    $region32: #{tpu_custom_call.1} parent=1 // pred_region
      %68 = dma.done [#allocation6], 3840
    $region33: #{tpu_custom_call.1} parent=1 // pred_fallthru
      _
    // Predicated region
    $region34: #{tpu_custom_call.1} parent=1 // pred_check
      _
    $region35: #{tpu_custom_call.1} parent=1 // pred_check_branch
      %70 = sbr.rel (0) target = $region37
    $region36: #{tpu_custom_call.1} parent=1 // pred_region
      %71 = dma.done [#allocation9], 128
    $region37: #{tpu_custom_call.1} parent=1 // pred_fallthru
      _
    %v72 = vld [vmem:[#allocation2] sm:$0xff]
    %v73 = vld [vmem:[#allocation5] sm:$0xff]
    %v74 = vld [vmem:[#allocation5 + $0x8] sm:$0xff]
    %vm75 = vcmask 261120
    %v77 = vsel %vm75, %v72, 0
    %v80 = vsel %vm75, %v73, 0
    %v83 = vsel %vm75, %v74, 0
    %85 = vmatprep.subr.mxu0 0.0
    %86 = vmatpush1.xpose.msra.mxu0 0.0
    %87 = vmatprep.subr.mxu0 0.0
    %88 = vmatpush1.xpose.msra.mxu0 0.0
    %89 = vmatprep.subr.mxu0 0.0
    %90 = vmatpush1.xpose.msra.mxu0 0.0
    %91 = vmatprep.subr.mxu0 0.0
    %92 = vmatpush1.xpose.msra.mxu0 0.0
    %93 = vmatprep.subr.mxu0 0.0
    %94 = vmatpush1.xpose.msra.mxu0 0.0
    %95 = vmatprep.subr.mxu0 0.0
    %96 = vmatpush1.xpose.msra.mxu0 0.0
    %97 = vmatprep.subr.mxu0 0.0
    %98 = vmatpush1.xpose.msra.mxu0 0.0
    %99 = vmatprep.subr.mxu0 0.0
    %100 = vmatpush1.xpose.msra.mxu0 0.0
    %101 = vmatprep.subr.mxu0 0.0
    %102 = vmatpush1.xpose.msra.mxu0 0.0
    %103 = vmatprep.subr.mxu0 0.0
    %104 = vmatpush1.xpose.msra.mxu0 0.0
    %105 = vmatprep.subr.mxu0 0.0
    %106 = vmatpush1.xpose.msra.mxu0 0.0
    %107 = vmatprep.subr.mxu0 0.0
    %108 = vmatpush1.xpose.msra.mxu0 0.0
    %109 = vmatprep.subr.mxu0 0.0
    %110 = vmatpush1.xpose.msra.mxu0 0.0
    %111 = vmatprep.subr.mxu0 0.0
    %112 = vmatpush1.xpose.msra.mxu0 0.0
    %113 = vmatprep.subr.mxu0 0.0
    %114 = vmatpush1.xpose.msra.mxu0 %v83
    %115 = vmatprep.subr.mxu0 0.0
    %116 = vmatpush1.xpose.msra.mxu0 %v80
    %117 = vmatprep.subr.mxu0 0.0
    %118 = vmatpush2.xpose.msra.mxu0 0.0
    %119 = vmatprep.subr.mxu0 0.0
    %120 = vmatpush2.xpose.msra.mxu0 0.0
    %121 = vmatprep.subr.mxu0 0.0
    %122 = vmatpush2.xpose.msra.mxu0 0.0
    %123 = vmatprep.subr.mxu0 0.0
    %124 = vmatpush2.xpose.msra.mxu0 0.0
    %125 = vmatprep.subr.mxu0 0.0
    %126 = vmatpush2.xpose.msra.mxu0 0.0
    %127 = vmatprep.subr.mxu0 0.0
    %128 = vmatpush2.xpose.msra.mxu0 0.0
    %129 = vmatprep.subr.mxu0 0.0
    %130 = vmatpush2.xpose.msra.mxu0 0.0
    %131 = vmatprep.subr.mxu0 0.0
    %132 = vmatpush2.xpose.msra.mxu0 0.0
    %133 = vmatprep.subr.mxu0 0.0
    %134 = vmatpush2.xpose.msra.mxu0 0.0
    %135 = vmatprep.subr.mxu0 0.0
    %136 = vmatpush2.xpose.msra.mxu0 0.0
    %137 = vmatprep.subr.mxu0 0.0
    %138 = vmatpush2.xpose.msra.mxu0 0.0
    %139 = vmatprep.subr.mxu0 0.0
    %140 = vmatpush2.xpose.msra.mxu0 0.0
    %141 = vmatprep.subr.mxu0 0.0
    %142 = vmatpush2.xpose.msra.mxu0 0.0
    %143 = vmatprep.subr.mxu0 0.0
    %144 = vmatpush2.xpose.msra.mxu0 0.0
    %145 = vmatprep.subr.mxu0 0.0
    %146 = vmatpush2.xpose.msra.mxu0 0.0
    %147 = vmatprep.subr.mxu0 0.0
    %148 = vmatpush2.xpose.msra.mxu0 0.0
    %149 = vmatprep.mubr.f32.mxu0 0.0
    %150 = vmatmul.mubr.f32.gmra.mxu0 %v77
    %v151 = vpop.f32.mrf.mxu0
    %v152 = vadd.f32 0.0, %v151
    %v153 = vpop.f32.mrf.mxu0
    %154 = vdwg.mxu0
    %vm155 = vcmask 130048
    %v156 = vsel %vm155, %v152, 0.0
    %v157 = vrot.slane %v156, 4
    %v158 = vadd.f32 %v156, %v157
    %v159 = vrot.slane %v158, 2
    %v160 = vadd.f32 %v158, %v159
    %v161 = vrot.slane %v160, 1
    %v162 = vadd.f32 %v160, %v161
    %v163 = vmul.f32 %v162, 0.125
    %v164 = vmul.f32 %v152, %v152
    %v165 = vsel %vm155, %v164, 0.0
    %v166 = vrot.slane %v165, 4
    %v167 = vadd.f32 %v165, %v166
    %v168 = vrot.slane %v167, 2
    %v169 = vadd.f32 %v167, %v168
    %v170 = vrot.slane %v169, 1
    %v171 = vadd.f32 %v169, %v170
    %v172 = vmul.f32 %v171, 0.125
    %v173 = vmul.f32 %v163, %v163
    %v174 = vsub.f32 %v172, %v173
    %v175 = vmax.f32 %v174, 0.0
    %v176 = vld [vmem:[%s2] sm:$0x1]
    %v177 = vadd.f32 %v175, 1e-05
    %v178 = vrsqrt.pop %v177
    %v179 = vmul.f32 %v176, %v178
    %v180 = vld [vmem:[%s2 + $0x1] sm:$0x1]
    %v181 = vmul.f32 %v163, %v179
    %v182 = vsub.f32 %v180, %v181
    %v183 = vlaneseq
    %v184 = vshrl.u32 %v183, 7
    %v185 = vsub.s32 0, %v184
    %v186 = vrot.slane %v179, %v185
    %v187 = vmul.f32 %v152, %v186
    %v188 = vlaneseq
    %v189 = vshrl.u32 %v188, 7
    %v190 = vsub.s32 0, %v189
    %v191 = vrot.slane %v182, %v190
    %v192 = vadd.f32 %v187, %v191
    %vm193 = vcmp.gt.f32.partialorder %v192, 0.0
    %v194 = vmul.f32 %v192, 0.2
    %v195 = vsel %vm193, %v192, %v194
    %v196 = vld [vmem:[#allocation8] sm:$0xff]
    %198 = vrot.lane.b32.xlu0 %v195, 64
    %v199 = vpop.permute.xlu0 %198
    %vm201 = vcmask 523264
    %v202 = vsel %vm201, %v196, %v199
    %v203 = vld [vmem:[#allocation7] sm:$0xff]
    %v204 = vld [vmem:[#allocation7 + $0x8] sm:$0xff]
    %v205 = vld [vmem:[#allocation7 + $0x10] sm:$0xff]
    %v206 = vld [vmem:[#allocation7 + $0x18] sm:$0xff]
    %v207 = vld [vmem:[#allocation7 + $0x20] sm:$0xff]
    %v208 = vld [vmem:[#allocation7 + $0x28] sm:$0xff]
    %v209 = vld [vmem:[#allocation7 + $0x30] sm:$0xff]
    %v210 = vld [vmem:[#allocation7 + $0x38] sm:$0xff]
    %v211 = vld [vmem:[#allocation7 + $0x40] sm:$0xff]
    %v212 = vld [vmem:[#allocation7 + $0x48] sm:$0xff]
    %v213 = vld [vmem:[#allocation7 + $0x50] sm:$0xff]
    %v214 = vld [vmem:[#allocation7 + $0x58] sm:$0xff]
    %v215 = vld [vmem:[#allocation7 + $0x60] sm:$0xff]
    %v216 = vld [vmem:[#allocation7 + $0x68] sm:$0xff]
    %v217 = vld [vmem:[#allocation7 + $0x70] sm:$0xff]
    %v218 = vld [vmem:[#allocation7 + $0x78] sm:$0xff]
    %v219 = vld [vmem:[#allocation7 + $0x80] sm:$0xff]
    %v220 = vld [vmem:[#allocation7 + $0x88] sm:$0xff]
    %v221 = vld [vmem:[#allocation7 + $0x90] sm:$0xff]
    %v222 = vld [vmem:[#allocation7 + $0x98] sm:$0xff]
    %v223 = vld [vmem:[#allocation7 + $0xa0] sm:$0xff]
    %v224 = vld [vmem:[#allocation7 + $0xa8] sm:$0xff]
    %v225 = vld [vmem:[#allocation7 + $0xb0] sm:$0xff]
    %v226 = vld [vmem:[#allocation7 + $0xb8] sm:$0xff]
    %v227 = vld [vmem:[#allocation7 + $0xc0] sm:$0xff]
    %v228 = vld [vmem:[#allocation7 + $0xc8] sm:$0xff]
    %v229 = vld [vmem:[#allocation7 + $0xd0] sm:$0xff]
    %v230 = vld [vmem:[#allocation7 + $0xd8] sm:$0xff]
    %v231 = vld [vmem:[#allocation7 + $0xe0] sm:$0xff]
    %v232 = vld [vmem:[#allocation7 + $0xe8] sm:$0xff]
    %vm233 = vcmask 654336
    %v235 = vsel %vm233, %v202, 0
    %237 = vmatprep.subr.mxu0 0.0
    %238 = vmatpush1.msra.mxu0 0.0
    %239 = vmatprep.subr.mxu0 0.0
    %240 = vmatpush1.msra.mxu0 0.0
    %241 = vmatprep.subr.mxu0 0.0
    %242 = vmatpush1.msra.mxu0 0.0
    %243 = vmatprep.subr.mxu0 0.0
    %244 = vmatpush1.msra.mxu0 0.0
    %245 = vmatprep.subr.mxu0 0.0
    %246 = vmatpush1.msra.mxu0 0.0
    %247 = vmatprep.subr.mxu0 0.0
    %248 = vmatpush1.msra.mxu0 0.0
    %249 = vmatprep.subr.mxu0 %v231
    %250 = vmatpush1.msra.mxu0 %v230
    %251 = vmatprep.subr.mxu0 %v228
    %252 = vmatpush1.msra.mxu0 %v227
    %253 = vmatprep.subr.mxu0 %v225
    %254 = vmatpush1.msra.mxu0 %v224
    %255 = vmatprep.subr.mxu0 %v222
    %256 = vmatpush1.msra.mxu0 %v221
    %257 = vmatprep.subr.mxu0 %v219
    %258 = vmatpush1.msra.mxu0 %v218
    %259 = vmatprep.subr.mxu0 %v216
    %260 = vmatpush1.msra.mxu0 %v215
    %261 = vmatprep.subr.mxu0 %v213
    %262 = vmatpush1.msra.mxu0 %v212
    %263 = vmatprep.subr.mxu0 %v210
    %264 = vmatpush1.msra.mxu0 %v209
    %265 = vmatprep.subr.mxu0 %v207
    %266 = vmatpush1.msra.mxu0 %v206
    %267 = vmatprep.subr.mxu0 %v204
    %268 = vmatpush1.msra.mxu0 %v203
    %269 = vmatprep.subr.mxu0 0.0
    %270 = vmatpush2.msra.mxu0 0.0
    %271 = vmatprep.subr.mxu0 0.0
    %272 = vmatpush2.msra.mxu0 0.0
    %273 = vmatprep.subr.mxu0 0.0
    %274 = vmatpush2.msra.mxu0 0.0
    %275 = vmatprep.subr.mxu0 0.0
    %276 = vmatpush2.msra.mxu0 0.0
    %277 = vmatprep.subr.mxu0 0.0
    %278 = vmatpush2.msra.mxu0 0.0
    %279 = vmatprep.subr.mxu0 0.0
    %280 = vmatpush2.msra.mxu0 0.0
    %281 = vmatprep.subr.mxu0 0.0
    %282 = vmatpush2.msra.mxu0 0.0
    %283 = vmatprep.subr.mxu0 0.0
    %284 = vmatpush2.msra.mxu0 0.0
    %285 = vmatprep.subr.mxu0 0.0
    %286 = vmatpush2.msra.mxu0 0.0
    %287 = vmatprep.subr.mxu0 0.0
    %288 = vmatpush2.msra.mxu0 0.0
    %289 = vmatprep.subr.mxu0 0.0
    %290 = vmatpush2.msra.mxu0 0.0
    %291 = vmatprep.subr.mxu0 0.0
    %292 = vmatpush2.msra.mxu0 0.0
    %293 = vmatprep.subr.mxu0 0.0
    %294 = vmatpush2.msra.mxu0 0.0
    %295 = vmatprep.subr.mxu0 0.0
    %296 = vmatpush2.msra.mxu0 0.0
    %297 = vmatprep.subr.mxu0 0.0
    %298 = vmatpush2.msra.mxu0 0.0
    %299 = vmatprep.subr.mxu0 0.0
    %300 = vmatpush2.msra.mxu0 0.0
    %301 = vmatprep.mubr.f32.mxu0 0.0
    %302 = vmatmul.mubr.f32.gmra.mxu0 %v235
    %v303 = vpop.f32.mrf.mxu0
    %v304 = vadd.f32 0.0, %v303
    %v305 = vpop.f32.mrf.mxu0
    %v306 = vadd.f32 0.0, %v305
    %307 = vdwg.mxu0
    %308 = vmatprep.subr.mxu0 0.0
    %309 = vmatpush1.msra.mxu0 0.0
    %310 = vmatprep.subr.mxu0 0.0
    %311 = vmatpush1.msra.mxu0 0.0
    %312 = vmatprep.subr.mxu0 0.0
    %313 = vmatpush1.msra.mxu0 0.0
    %314 = vmatprep.subr.mxu0 0.0
    %315 = vmatpush1.msra.mxu0 0.0
    %316 = vmatprep.subr.mxu0 0.0
    %317 = vmatpush1.msra.mxu0 0.0
    %318 = vmatprep.subr.mxu0 0.0
    %319 = vmatpush1.msra.mxu0 0.0
    %320 = vmatprep.subr.mxu0 0.0
    %321 = vmatpush1.msra.mxu0 %v232
    %322 = vmatprep.subr.mxu0 0.0
    %323 = vmatpush1.msra.mxu0 %v229
    %324 = vmatprep.subr.mxu0 0.0
    %325 = vmatpush1.msra.mxu0 %v226
    %326 = vmatprep.subr.mxu0 0.0
    %327 = vmatpush1.msra.mxu0 %v223
    %328 = vmatprep.subr.mxu0 0.0
    %329 = vmatpush1.msra.mxu0 %v220
    %330 = vmatprep.subr.mxu0 0.0
    %331 = vmatpush1.msra.mxu0 %v217
    %332 = vmatprep.subr.mxu0 0.0
    %333 = vmatpush1.msra.mxu0 %v214
    %334 = vmatprep.subr.mxu0 0.0
    %335 = vmatpush1.msra.mxu0 %v211
    %336 = vmatprep.subr.mxu0 0.0
    %337 = vmatpush1.msra.mxu0 %v208
    %338 = vmatprep.subr.mxu0 0.0
    %339 = vmatpush1.msra.mxu0 %v205
    %340 = vmatprep.subr.mxu0 0.0
    %341 = vmatpush2.msra.mxu0 0.0
    %342 = vmatprep.subr.mxu0 0.0
    %343 = vmatpush2.msra.mxu0 0.0
    %344 = vmatprep.subr.mxu0 0.0
    %345 = vmatpush2.msra.mxu0 0.0
    %346 = vmatprep.subr.mxu0 0.0
    %347 = vmatpush2.msra.mxu0 0.0
    %348 = vmatprep.subr.mxu0 0.0
    %349 = vmatpush2.msra.mxu0 0.0
    %350 = vmatprep.subr.mxu0 0.0
    %351 = vmatpush2.msra.mxu0 0.0
    %352 = vmatprep.subr.mxu0 0.0
    %353 = vmatpush2.msra.mxu0 0.0
    %354 = vmatprep.subr.mxu0 0.0
    %355 = vmatpush2.msra.mxu0 0.0
    %356 = vmatprep.subr.mxu0 0.0
    %357 = vmatpush2.msra.mxu0 0.0
    %358 = vmatprep.subr.mxu0 0.0
    %359 = vmatpush2.msra.mxu0 0.0
    %360 = vmatprep.subr.mxu0 0.0
    %361 = vmatpush2.msra.mxu0 0.0
    %362 = vmatprep.subr.mxu0 0.0
    %363 = vmatpush2.msra.mxu0 0.0
    %364 = vmatprep.subr.mxu0 0.0
    %365 = vmatpush2.msra.mxu0 0.0
    %366 = vmatprep.subr.mxu0 0.0
    %367 = vmatpush2.msra.mxu0 0.0
    %368 = vmatprep.subr.mxu0 0.0
    %369 = vmatpush2.msra.mxu0 0.0
    %370 = vmatprep.subr.mxu0 0.0
    %371 = vmatpush2.msra.mxu0 0.0
    %372 = vmatprep.mubr.f32.mxu0 0.0
    %373 = vmatmul.mubr.f32.gmra.mxu0 %v235
    %v374 = vpop.f32.mrf.mxu0
    %v375 = vadd.f32 0.0, %v374
    %v376 = vpop.f32.mrf.mxu0
    %377 = vdwg.mxu0
    %378 = vst [vmem:[#allocation10] sm:$0xff] %v304
    %379 = vst [vmem:[#allocation10 + $0x8] sm:$0xff] %v306
    %380 = vst.msk [vmem:[#allocation10 + $0x10] sm:$0xff] %vm201, %v375
    // Predicated region
    $region38: #{tpu_custom_call.1} parent=1 // pred_check
      _
    $region39: #{tpu_custom_call.1} parent=1 // pred_check_branch
      %382 = sbr.rel (0) target = $region41
    $region40: #{tpu_custom_call.1} parent=1 // pred_region
      %s384 = ssub.s32 384, 384
      %385 = vsyncadd [#allocation4], %s384
      %s387 = sshll.u32 [#allocation10], 4
      %s388 = int_to_ptr.vmem [resolvable:$true] %s387
      %390 = dma.vmem_to_hbm [thread:$0]  %s388, 384, %s5, [#allocation4]
    $region41: #{tpu_custom_call.1} parent=1 // pred_fallthru
      _
    // Predicated region
    $region42: #{tpu_custom_call.1} parent=1 // pred_check
      _
    $region43: #{tpu_custom_call.1} parent=1 // pred_check_branch
      %392 = sbr.rel (0) target = $region45
    $region44: #{tpu_custom_call.1} parent=1 // pred_region
      %393 = dma.done [#allocation4], 384
    $region45: #{tpu_custom_call.1} parent=1 // pred_fallthru
      _
    %394 = vsyncpa [#allocation3], 1
    %395 = vsyncpa [#allocation6], 1
    %396 = vsyncpa [#allocation9], 1
    %397 = vsyncpa [#allocation4], 1

</llo_original>
